<compile_context>
chip_gen: v6e
topology: v6e:2x2x1
jax: 0.10.0
libtpu: 0.0.40
codegen_flags: <defaults>
</compile_context>

<pallas_src>
import functools
import math

import jax
import jax.numpy as jnp
from jax import lax
from jax.experimental import pallas as pl
from jax.experimental.pallas import tpu as pltpu


def _round_up(v, m):
    return ((v + m - 1) // m) * m


def _equal_linear_kernel(x_ref, w_ref, b_ref, o_ref, *, scale, lr_mul, activation):
    """One (tm, N_p) output tile: MXU matmul + scaled epilogue (+ fused lrelu)."""
    x = x_ref[...]                      # (tm,  K_p)  -- kept in input dtype
    w = w_ref[...]                      # (N_p, K_p)  -- resident across grid steps

    # out[m, n] = sum_k x[m, k] * w[n, k]  (contract K on both operands; no W.T)
    out = lax.dot_general(
        x, w,
        dimension_numbers=(((1,), (1,)), ((), ())),
        preferred_element_type=jnp.float32,
    )                                   # (tm, N_p) f32 accumulation

    # Epilogue: scalar weight-scale moved off the weight tensor onto the result.
    out = out * scale + b_ref[...].astype(jnp.float32) * lr_mul

    if activation:  # PyTorch: any truthy activation -> fused_leaky_relu
        sqrt2 = 2.0 ** 0.5
        out = jnp.where(out >= 0.0, out * sqrt2, out * (0.2 * sqrt2))

    o_ref[...] = out.astype(o_ref.dtype)


def equal_linear(x, weight, bias, *, lr_mul=1.0, activation=None, block_m=512):
    """Matches EqualLinear.forward. x: (..., in_dim); weight: (out_dim, in_dim)."""
    out_dim, in_dim = weight.shape
    scale = 1.0 / math.sqrt(in_dim) * lr_mul

    orig_shape = x.shape
    x2 = x.reshape(-1, in_dim)
    M = x2.shape[0]

    # Pad to TPU-friendly sizes: lanes (last dim) -> 128, rows -> tile of 8.
    K_p = _round_up(in_dim, 128)
    N_p = _round_up(out_dim, 128)
    tm = min(_round_up(M, 8), block_m)
    M_p = _round_up(M, tm)

    if (M_p, K_p) != (M, in_dim):
        x2 = jnp.pad(x2, ((0, M_p - M), (0, K_p - in_dim)))
    w_p = weight
    if (N_p, K_p) != (out_dim, in_dim):
        w_p = jnp.pad(weight, ((0, N_p - out_dim), (0, K_p - in_dim)))
    b_p = bias.reshape(1, out_dim)
    if N_p != out_dim:
        b_p = jnp.pad(b_p, ((0, 0), (0, N_p - out_dim)))

    grid = (M_p // tm,)

    # VMEM budget: resident W + bias, double-buffered x/out tiles, f32 epilogue tile.
    x_item = jnp.dtype(x2.dtype).itemsize
    o_item = jnp.dtype(x.dtype).itemsize
    needed = (
        N_p * K_p * jnp.dtype(w_p.dtype).itemsize     # resident weight
        + N_p * jnp.dtype(b_p.dtype).itemsize         # resident bias
        + 2 * tm * K_p * x_item                       # double-buffered x tiles
        + 2 * tm * N_p * o_item                       # double-buffered out tiles
        + tm * N_p * 4                                # f32 intermediate
    )
    vmem_limit = int(min(max(2 * needed, 4 << 20), 64 << 20))

    kernel = functools.partial(
        _equal_linear_kernel, scale=scale, lr_mul=lr_mul, activation=activation
    )

    out = pl.pallas_call(
        kernel,
        out_shape=jax.ShapeDtypeStruct((M_p, N_p), x.dtype),
        grid_spec=pltpu.PrefetchScalarGridSpec(
            num_scalar_prefetch=0,
            grid=grid,
            in_specs=[
                pl.BlockSpec((tm, K_p), lambda i: (i, 0)),      # x: tiled over M
                pl.BlockSpec((N_p, K_p), lambda i: (0, 0)),     # W: resident
                pl.BlockSpec((1, N_p), lambda i: (0, 0)),       # bias: resident
            ],
            out_specs=pl.BlockSpec((tm, N_p), lambda i: (i, 0)),
        ),
        compiler_params=pltpu.CompilerParams(
            dimension_semantics=("parallel",),
            vmem_limit_bytes=vmem_limit,
        ),
    )(x2, w_p, b_p)

    out = out[:M, :out_dim]
    return out.reshape(*orig_shape[:-1], out_dim)


def _reference(x, weight, bias, *, lr_mul=1.0, activation=None):
    """Pure-JAX mirror of the PyTorch forward for checking."""
    in_dim = weight.shape[1]
    scale = 1.0 / math.sqrt(in_dim) * lr_mul
    out = x @ (weight * scale).T + bias * lr_mul
    if activation:
        out = jnp.where(out >= 0, out, out * 0.2) * (2.0 ** 0.5)
    return out


if __name__ == "__main__":
    key = jax.random.PRNGKey(0)
    k_x, k_w, k_x3 = jax.random.split(key, 3)

    batch, in_dim, out_dim = 2, 32, 64
    lr_mul = 0.01          # typical StyleCLIP mapper setting
    bias_init = 0.0

    # Parameters as EqualLinear.__init__ builds them:
    #   weight = randn(out_dim, in_dim) / lr_mul ; bias = zeros(out_dim) + bias_init
    weight = jax.random.normal(k_w, (out_dim, in_dim), dtype=jnp.float32) / lr_mul
    bias = jnp.full((out_dim,), bias_init, dtype=jnp.float32)

    x = jax.random.normal(k_x, (batch, in_dim), dtype=jnp.float32)
    x3 = jax.random.normal(k_x3, (batch, 4, in_dim), dtype=jnp.float32)  # 3-D latents

    # fused leaky-relu branch (the mapper's common path)
    out_act = jax.block_until_ready(
        equal_linear(x, weight, bias, lr_mul=lr_mul, activation="fused_lrelu"))
    ref_act = _reference(x, weight, bias, lr_mul=lr_mul, activation="fused_lrelu")

    # plain linear branch
    out_lin = jax.block_until_ready(
        equal_linear(x, weight, bias, lr_mul=lr_mul, activation=None))
    ref_lin = _reference(x, weight, bias, lr_mul=lr_mul, activation=None)

    # 3-D input path (flattened in the wrapper)
    out_3d = jax.block_until_ready(
        equal_linear(x3, weight, bias, lr_mul=lr_mul, activation="fused_lrelu"))
    ref_3d = _reference(x3, weight, bias, lr_mul=lr_mul, activation="fused_lrelu")

    assert out_act.shape == (batch, out_dim)
    assert out_lin.shape == (batch, out_dim)
    assert out_3d.shape == (batch, 4, out_dim)
    assert jnp.allclose(out_act, ref_act, atol=1e-4, rtol=1e-4)
    assert jnp.allclose(out_lin, ref_lin, atol=1e-4, rtol=1e-4)
    assert jnp.allclose(out_3d, ref_3d, atol=1e-4, rtol=1e-4)

    print("KERNEL_OK")
</pallas_src>

<mosaic_0001>
module attributes {stable_mosaic.version = 11 : i64} {
  func.func @_equal_linear_kernel(%arg0: i32, %arg1: memref<8x128xf32, #tpu.memory_space<vmem>>, %arg2: memref<128x128xf32, #tpu.memory_space<vmem>>, %arg3: memref<1x128xf32, #tpu.memory_space<vmem>>, %arg4: memref<8x128xf32, #tpu.memory_space<vmem>>) attributes {dimension_semantics = [#tpu.dimension_semantics<parallel>], iteration_bounds = array<i64: 1>, scalar_prefetch = 0 : i64, scratch_operands = 0 : i64, tpu.core_type = #tpu.core_type<tc>, window_params = [{transform_indices = @transform_0, window_bounds = array<i64: 8, 128>}, {pipeline_mode = #tpu.pipeline_mode<synchronous>, transform_indices = @transform_1, window_bounds = array<i64: 128, 128>}, {pipeline_mode = #tpu.pipeline_mode<synchronous>, transform_indices = @transform_2, window_bounds = array<i64: 1, 128>}, {transform_indices = @transform_3, window_bounds = array<i64: 8, 128>}]} {
    %c0 = arith.constant 0 : index
    %c0_0 = arith.constant 0 : index
    %0 = vector.load %arg1[%c0, %c0_0] : memref<8x128xf32, #tpu.memory_space<vmem>>, vector<8x128xf32>
    %c0_1 = arith.constant 0 : index
    %c0_2 = arith.constant 0 : index
    %1 = vector.load %arg2[%c0_1, %c0_2] : memref<128x128xf32, #tpu.memory_space<vmem>>, vector<128x128xf32>
    %cst = arith.constant dense<0.000000e+00> : vector<8x128xf32>
    %2 = tpu.matmul %0, %1, %cst {dimension_numbers = #tpu.dot_dimension_numbers<[1], [1], [0], [0], [0, 0, 1, 0], [], []>} : vector<8x128xf32>, vector<128x128xf32>, vector<8x128xf32> -> vector<8x128xf32>
    %cst_3 = arith.constant 0.00176776689 : f32
    %3 = vector.broadcast %cst_3 : f32 to vector<8x128xf32>
    %4 = arith.mulf %2, %3 : vector<8x128xf32>
    %c0_4 = arith.constant 0 : index
    %c0_5 = arith.constant 0 : index
    %5 = vector.load %arg3[%c0_4, %c0_5] : memref<1x128xf32, #tpu.memory_space<vmem>>, vector<1x128xf32>
    %cst_6 = arith.constant 0.00999999977 : f32
    %6 = vector.broadcast %cst_6 : f32 to vector<1x128xf32>
    %7 = arith.mulf %5, %6 : vector<1x128xf32>
    %8 = vector.broadcast %7 : vector<1x128xf32> to vector<8x128xf32>
    %9 = arith.addf %4, %8 : vector<8x128xf32>
    %cst_7 = arith.constant 0.000000e+00 : f32
    %10 = vector.broadcast %cst_7 : f32 to vector<8x128xf32>
    %11 = arith.cmpf oge, %9, %10 : vector<8x128xf32>
    %cst_8 = arith.constant 1.41421354 : f32
    %12 = vector.broadcast %cst_8 : f32 to vector<8x128xf32>
    %13 = arith.mulf %9, %12 : vector<8x128xf32>
    %cst_9 = arith.constant 0.282842726 : f32
    %14 = vector.broadcast %cst_9 : f32 to vector<8x128xf32>
    %15 = arith.mulf %9, %14 : vector<8x128xf32>
    %16 = arith.select %11, %13, %15 : vector<8x128xi1>, vector<8x128xf32>
    %c0_10 = arith.constant 0 : index
    %c0_11 = arith.constant 0 : index
    %17 = vector.load %arg4[%c0_10, %c0_11] : memref<8x128xf32, #tpu.memory_space<vmem>>, vector<8x128xf32>
    tpu.vector_store %arg4[%c0_10, %c0_11], %16 {strides = array<i32>} : memref<8x128xf32, #tpu.memory_space<vmem>>, vector<8x128xf32>,
    return
  }
  func.func @transform_0(%arg0: i32) -> (i32, i32) {
    %c0_i32 = arith.constant 0 : i32
    %c0_i32_0 = arith.constant 0 : i32
    return %arg0, %c0_i32 : i32, i32
  }
  func.func @transform_1(%arg0: i32) -> (i32, i32) {
    %c0_i32 = arith.constant 0 : i32
    %c0_i32_0 = arith.constant 0 : i32
    %c0_i32_1 = arith.constant 0 : i32
    return %c0_i32, %c0_i32_0 : i32, i32
  }
  func.func @transform_2(%arg0: i32) -> (i32, i32) {
    %c0_i32 = arith.constant 0 : i32
    %c0_i32_0 = arith.constant 0 : i32
    %c0_i32_1 = arith.constant 0 : i32
    return %c0_i32, %c0_i32_0 : i32, i32
  }
  func.func @transform_3(%arg0: i32) -> (i32, i32) {
    %c0_i32 = arith.constant 0 : i32
    %c0_i32_0 = arith.constant 0 : i32
    return %arg0, %c0_i32 : i32, i32
  }
}

</mosaic_0001>

<llo_original>
// kernel: tpu_custom_call.1
$region0: #{tpu_custom_call.1}
  #allocation0 [shape = 'u32[]', space=smem, size = 0x4, offset = 0x4, fixed_abs, tag = 'smem constant byte address 0x4 - core index']
  #allocation1 [shape = 'u32[144,128]{1,0:T(1,128)}', space=vmem, size = 0x12000, scoped, tag = 'internal scratch']
  %s0 = inlined_call_operand.hbm [shape: f32[8,128], index: 0, kind: input, shape index: {}]
  %s1 = inlined_call_operand.hbm [shape: f32[128,128], index: 1, kind: input, shape index: {}]
  %s2 = inlined_call_operand.vmem [shape: f32[1,128], index: 2, kind: input, shape index: {}]
  %s3 = inlined_call_operand.hbm [shape: f32[8,128], index: 3, kind: output, shape index: {}]
  %s4 = sld [smem:[#allocation0]]
  $region30: #{tpu_custom_call.1} parent=0
    _
  %s6 = ssub.s32 1, %s4
  %s7 = scalar_select 0, %s6, %s4
  $region1: #{tpu_custom_call.1} parent=0
    #allocation2 [shape = 'u8[4096]{0}', space=vmem, size = 0x1000, scoped, tag = 'input window, operand 0, single buffered']
    #allocation3 [shape = 's32[1]{0}', space=sflag, size = 0x4, scoped, tag = 'scoped memory for tpu_custom_call.1']
    #allocation4 [shape = 's32[1]{0}', space=sflag, size = 0x4, scoped, tag = 'scoped memory for tpu_custom_call.1']
    #allocation5 [shape = 'u8[65536]{0}', space=vmem, size = 0x10000, scoped, tag = 'input window, operand 1, single buffered']
    #allocation6 [shape = 's32[1]{0}', space=sflag, size = 0x4, scoped, tag = 'scoped memory for tpu_custom_call.1']
    #allocation7 [shape = 'u8[4096]{0}', space=vmem, size = 0x1000, scoped, tag = 'output window, operand 0, single buffered']
    %8 = vsyncpa [#allocation3], 0
    %9 = vsyncpa [#allocation6], 0
    %10 = vsyncpa [#allocation4], 0
    // Predicated region
    $region2: #{tpu_custom_call.1} parent=1 // pred_check
      _
    $region3: #{tpu_custom_call.1} parent=1 // pred_check_branch
      %12 = sbr.rel (0) target = $region5
    $region4: #{tpu_custom_call.1} parent=1 // pred_region
      %s14 = ssub.s32 128, 128
      %15 = vsyncadd [#allocation3], %s14
      %s17 = sshll.u32 [#allocation2], 4
      %s18 = int_to_ptr.vmem [resolvable:$true] %s17
      %20 = dma.hbm_to_vmem [thread:$0]  %s0, 128, %s18, [#allocation3]
    $region5: #{tpu_custom_call.1} parent=1 // pred_fallthru
      _
    // Predicated region
    $region6: #{tpu_custom_call.1} parent=1 // pred_check
      _
    $region7: #{tpu_custom_call.1} parent=1 // pred_check_branch
      %22 = sbr.rel (0) target = $region9
    $region8: #{tpu_custom_call.1} parent=1 // pred_region
      %s24 = ssub.s32 2048, 2048
      %25 = vsyncadd [#allocation6], %s24
      %s26 = sshll.u32 [#allocation5], 4
      %s27 = int_to_ptr.vmem [resolvable:$true] %s26
      %32 = dma.hbm_to_vmem [thread:$0]  %s1, 2048, %s27, [#allocation6], 128, 128, 8
    $region9: #{tpu_custom_call.1} parent=1 // pred_fallthru
      _
    // Predicated region
    $region10: #{tpu_custom_call.1} parent=1 // pred_check
      _
    $region11: #{tpu_custom_call.1} parent=1 // pred_check_branch
      %34 = sbr.rel (0) target = $region13
    $region12: #{tpu_custom_call.1} parent=1 // pred_region
      _
    $region13: #{tpu_custom_call.1} parent=1 // pred_fallthru
      _
    // Predicated region
    $region14: #{tpu_custom_call.1} parent=1 // pred_check
      _
    $region15: #{tpu_custom_call.1} parent=1 // pred_check_branch
      %36 = sbr.rel (0) target = $region17
    $region16: #{tpu_custom_call.1} parent=1 // pred_region
      %37 = dma.done [#allocation3], 128
    $region17: #{tpu_custom_call.1} parent=1 // pred_fallthru
      _
    // Predicated region
    $region18: #{tpu_custom_call.1} parent=1 // pred_check
      _
    $region19: #{tpu_custom_call.1} parent=1 // pred_check_branch
      %39 = sbr.rel (0) target = $region21
    $region20: #{tpu_custom_call.1} parent=1 // pred_region
      %40 = dma.done [#allocation6], 2048
    $region21: #{tpu_custom_call.1} parent=1 // pred_fallthru
      _
    %v41 = vld [vmem:[#allocation2] sm:$0xff]
    %v42 = vld [vmem:[#allocation5] sm:$0xff]
    %v43 = vld [vmem:[#allocation5 + $0x8] sm:$0xff]
    %v44 = vld [vmem:[#allocation5 + $0x10] sm:$0xff]
    %v45 = vld [vmem:[#allocation5 + $0x18] sm:$0xff]
    %v46 = vld [vmem:[#allocation5 + $0x20] sm:$0xff]
    %v47 = vld [vmem:[#allocation5 + $0x28] sm:$0xff]
    %v48 = vld [vmem:[#allocation5 + $0x30] sm:$0xff]
    %v49 = vld [vmem:[#allocation5 + $0x38] sm:$0xff]
    %v50 = vld [vmem:[#allocation5 + $0x40] sm:$0xff]
    %v51 = vld [vmem:[#allocation5 + $0x48] sm:$0xff]
    %v52 = vld [vmem:[#allocation5 + $0x50] sm:$0xff]
    %v53 = vld [vmem:[#allocation5 + $0x58] sm:$0xff]
    %v54 = vld [vmem:[#allocation5 + $0x60] sm:$0xff]
    %v55 = vld [vmem:[#allocation5 + $0x68] sm:$0xff]
    %v56 = vld [vmem:[#allocation5 + $0x70] sm:$0xff]
    %v57 = vld [vmem:[#allocation5 + $0x78] sm:$0xff]
    %58 = vmatprep.subr.mxu0 0.0
    %59 = vmatpush1.xpose.msra.mxu0 %v57
    %60 = vmatprep.subr.mxu0 0.0
    %61 = vmatpush1.xpose.msra.mxu0 %v56
    %62 = vmatprep.subr.mxu0 0.0
    %63 = vmatpush1.xpose.msra.mxu0 %v55
    %64 = vmatprep.subr.mxu0 0.0
    %65 = vmatpush1.xpose.msra.mxu0 %v54
    %66 = vmatprep.subr.mxu0 0.0
    %67 = vmatpush1.xpose.msra.mxu0 %v53
    %68 = vmatprep.subr.mxu0 0.0
    %69 = vmatpush1.xpose.msra.mxu0 %v52
    %70 = vmatprep.subr.mxu0 0.0
    %71 = vmatpush1.xpose.msra.mxu0 %v51
    %72 = vmatprep.subr.mxu0 0.0
    %73 = vmatpush1.xpose.msra.mxu0 %v50
    %74 = vmatprep.subr.mxu0 0.0
    %75 = vmatpush1.xpose.msra.mxu0 %v49
    %76 = vmatprep.subr.mxu0 0.0
    %77 = vmatpush1.xpose.msra.mxu0 %v48
    %78 = vmatprep.subr.mxu0 0.0
    %79 = vmatpush1.xpose.msra.mxu0 %v47
    %80 = vmatprep.subr.mxu0 0.0
    %81 = vmatpush1.xpose.msra.mxu0 %v46
    %82 = vmatprep.subr.mxu0 0.0
    %83 = vmatpush1.xpose.msra.mxu0 %v45
    %84 = vmatprep.subr.mxu0 0.0
    %85 = vmatpush1.xpose.msra.mxu0 %v44
    %86 = vmatprep.subr.mxu0 0.0
    %87 = vmatpush1.xpose.msra.mxu0 %v43
    %88 = vmatprep.subr.mxu0 0.0
    %89 = vmatpush1.xpose.msra.mxu0 %v42
    %90 = vmatprep.subr.mxu0 0.0
    %91 = vmatpush2.xpose.msra.mxu0 0.0
    %92 = vmatprep.subr.mxu0 0.0
    %93 = vmatpush2.xpose.msra.mxu0 0.0
    %94 = vmatprep.subr.mxu0 0.0
    %95 = vmatpush2.xpose.msra.mxu0 0.0
    %96 = vmatprep.subr.mxu0 0.0
    %97 = vmatpush2.xpose.msra.mxu0 0.0
    %98 = vmatprep.subr.mxu0 0.0
    %99 = vmatpush2.xpose.msra.mxu0 0.0
    %100 = vmatprep.subr.mxu0 0.0
    %101 = vmatpush2.xpose.msra.mxu0 0.0
    %102 = vmatprep.subr.mxu0 0.0
    %103 = vmatpush2.xpose.msra.mxu0 0.0
    %104 = vmatprep.subr.mxu0 0.0
    %105 = vmatpush2.xpose.msra.mxu0 0.0
    %106 = vmatprep.subr.mxu0 0.0
    %107 = vmatpush2.xpose.msra.mxu0 0.0
    %108 = vmatprep.subr.mxu0 0.0
    %109 = vmatpush2.xpose.msra.mxu0 0.0
    %110 = vmatprep.subr.mxu0 0.0
    %111 = vmatpush2.xpose.msra.mxu0 0.0
    %112 = vmatprep.subr.mxu0 0.0
    %113 = vmatpush2.xpose.msra.mxu0 0.0
    %114 = vmatprep.subr.mxu0 0.0
    %115 = vmatpush2.xpose.msra.mxu0 0.0
    %116 = vmatprep.subr.mxu0 0.0
    %117 = vmatpush2.xpose.msra.mxu0 0.0
    %118 = vmatprep.subr.mxu0 0.0
    %119 = vmatpush2.xpose.msra.mxu0 0.0
    %120 = vmatprep.subr.mxu0 0.0
    %121 = vmatpush2.xpose.msra.mxu0 0.0
    %122 = vmatprep.mubr.f32.mxu0 0.0
    %123 = vmatmul.mubr.f32.gmra.mxu0 %v41
    %v124 = vpop.f32.mrf.mxu0
    %v125 = vadd.f32 0.0, %v124
    %v126 = vpop.f32.mrf.mxu0
    %127 = vdwg.mxu0
    %v128 = vmul.f32 %v125, 0.0017677669
    %v129 = vld [vmem:[%s2] sm:$0x1]
    %v130 = vmul.f32 %v129, 0.01
    %v132 = vlaneseq
    %v133 = vshrl.u32 %v132, 7
    %v134 = vsub.s32 0, %v133
    %v135 = vrot.slane %v130, %v134
    %v137 = vadd.f32 %v128, %v135
    %vm138 = vcmp.ge.f32.partialorder %v137, 0.0
    %v139 = vmul.f32 %v137, 1.4142135
    %v140 = vmul.f32 %v137, 0.28284273
    %v141 = vsel %vm138, %v139, %v140
    %142 = vst [vmem:[#allocation7] sm:$0xff] %v141
    // Predicated region
    $region22: #{tpu_custom_call.1} parent=1 // pred_check
      _
    $region23: #{tpu_custom_call.1} parent=1 // pred_check_branch
      %144 = sbr.rel (0) target = $region25
    $region24: #{tpu_custom_call.1} parent=1 // pred_region
      %s146 = ssub.s32 128, 128
      %147 = vsyncadd [#allocation4], %s146
      %s149 = sshll.u32 [#allocation7], 4
      %s150 = int_to_ptr.vmem [resolvable:$true] %s149
      %152 = dma.vmem_to_hbm [thread:$0]  %s150, 128, %s3, [#allocation4]
    $region25: #{tpu_custom_call.1} parent=1 // pred_fallthru
      _
    // Predicated region
    $region26: #{tpu_custom_call.1} parent=1 // pred_check
      _
    $region27: #{tpu_custom_call.1} parent=1 // pred_check_branch
      %154 = sbr.rel (0) target = $region29
    $region28: #{tpu_custom_call.1} parent=1 // pred_region
      %155 = dma.done [#allocation4], 128
    $region29: #{tpu_custom_call.1} parent=1 // pred_fallthru
      _
    %156 = vsyncpa [#allocation3], 1
    %157 = vsyncpa [#allocation6], 1
    %158 = vsyncpa [#allocation4], 1

</llo_original>
